<compile_context>
chip_gen: v7x
topology: tpu7x:2x2x1
jax: 0.10.0
libtpu: 0.0.40
codegen_flags: <defaults>
</compile_context>

<pallas_src>
import math
import functools

import numpy as np
import jax
import jax.numpy as jnp
from jax import lax
from jax.experimental import pallas as pl
from jax.experimental.pallas import tpu as pltpu


# ----------------------------------------------------------------------------
# Synthetic "clayer" (causal layer description) used by CausalMaskedMLP.__init__
# ----------------------------------------------------------------------------
class CLayer:
    def __init__(self, starts, ends, edges):
        self.starts = starts   # list of start node labels
        self.ends = ends       # list of end node labels
        self.edges = edges     # dict: end label -> set of start labels it may depend on


def generate_masks(clayer, layers):
    """Exact port of CausalMaskedMLP._generate_masks (masks are [out, in])."""
    masks = []
    s, n, e = len(clayer.starts), len(clayer.edges), len(clayer.ends)
    c = math.ceil(layers[1] / n)
    masks.append(
        [[1 if clayer.starts[i] in clayer.edges[clayer.ends[j // c]] else 0
          for i in range(layers[0])] for j in range(layers[1])]
    )
    for li in range(1, len(layers) - 2):
        masks.append(
            [[1 if i // c == j // c else 0 for i in range(layers[li])]
             for j in range(layers[li + 1])]
        )
    masks.append(
        [[1 if i // c == j % e else 0 for i in range(layers[-2])]
         for j in range(layers[-1])]
    )
    return [np.array(m, dtype=np.float32) for m in masks]


# ----------------------------------------------------------------------------
# Pallas kernel: masked-MLP forward for one batch tile.
#   activations: [features, TB]   (batch on lanes -> lane-dense matmuls/stores)
#   weights:     [out, in]        (mask pre-folded; resident across grid steps)
#   biases:      [out, 1]
# The batch tile is processed in 512-lane chunks to bound vreg pressure.
# ----------------------------------------------------------------------------
def _made_mlp_kernel(n_layers, n_chunks, chunk, unroll, xT_ref, *refs):
    # refs = (w0, b0, w1, b1, ..., out_ref)
    out_ref = refs[-1]
    ws = [refs[2 * li][...] for li in range(n_layers)]        # hoisted: loaded once
    bs = [refs[2 * li + 1][...] for li in range(n_layers)]

    def chunk_body(c, carry):
        start = pl.multiple_of(c * chunk, 128)
        h = xT_ref[:, pl.ds(start, chunk)].astype(jnp.float32)     # [in, chunk]
        for li in range(n_layers):
            h = jnp.dot(ws[li], h, preferred_element_type=jnp.float32) + bs[li]
            if li < n_layers - 1:                                   # ReLU between layers only
                h = jnp.maximum(h, 0.0)
        out_ref[:, pl.ds(start, chunk)] = h.astype(out_ref.dtype)
        return carry

    lax.fori_loop(0, n_chunks, chunk_body, 0, unroll=unroll)


def _resident_index_map(i):
    # Weights / biases: same block for every batch tile -> stay resident in VMEM.
    return (0, 0)


def _batch_tile_index_map(i):
    # Activations / output: tile i along the (lane) batch axis.
    return (0, i)


_LANE_CHUNK = 512


def _round_up(a, m):
    return ((a + m - 1) // m) * m


def causal_masked_mlp_forward_fmajor(xT, weights, masks, biases, *, max_block_batch=8192):
    """Primary (layout-free) entry point.

    xT: [in_dim, batch] feature-major activations. Returns [out_dim, batch].
    weights/masks are [out, in] per layer, biases [out].  No wrapper-side
    transpose / pad / slice: Pallas tiles the batch axis and masks edge tiles.
    """
    n_layers = len(weights)
    in_dim, batch = xT.shape
    out_dim = weights[-1].shape[0]

    # ---- Fold static masks into weights once (plain JAX, outside the kernel) ----
    masked_ws = [jnp.asarray(w) * jnp.asarray(m) for w, m in zip(weights, masks)]
    biases2d = [jnp.asarray(b).reshape(-1, 1) for b in biases]

    # ---- Batch-tile selection -------------------------------------------------
    #  - big tiles to amortize per-grid-step overhead
    #  - multiple of the 512-lane chunk size (and of 128) for dense lane access
    #  - at least 2 grid steps when the batch is big enough (v7x megacore)
    if batch <= _LANE_CHUNK:
        tb = max(128, _round_up(batch, 128))
        chunk = tb
    else:
        tb = min(_round_up(max_block_batch, _LANE_CHUNK), _round_up(batch, _LANE_CHUNK))
        if pl.cdiv(batch, tb) < 2:
            tb = max(_LANE_CHUNK,
                     _round_up(pl.cdiv(_round_up(batch, _LANE_CHUNK), 2), _LANE_CHUNK))
        chunk = _LANE_CHUNK
    n_chunks = tb // chunk
    grid = (pl.cdiv(batch, tb),)

    args = [xT]
    in_specs = [pl.BlockSpec((in_dim, tb), _batch_tile_index_map)]
    for w, b in zip(masked_ws, biases2d):
        args.append(w)
        in_specs.append(pl.BlockSpec(w.shape, _resident_index_map))
        args.append(b)
        in_specs.append(pl.BlockSpec(b.shape, _resident_index_map))

    out_spec = pl.BlockSpec((out_dim, tb), _batch_tile_index_map)

    flops = 2 * batch * sum(int(w.shape[0]) * int(w.shape[1]) for w in masked_ws)
    bytes_accessed = (
        int(xT.size) * 4
        + sum(int(w.size) * 4 + int(b.size) * 4 for w, b in zip(masked_ws, biases2d))
        + out_dim * batch * 4
    )

    kernel = functools.partial(_made_mlp_kernel, n_layers, n_chunks, chunk,
                               bool(n_chunks <= 8))

    outT = pl.pallas_call(
        kernel,
        out_shape=jax.ShapeDtypeStruct((out_dim, batch), jnp.float32),
        grid=grid,
        in_specs=in_specs,
        out_specs=out_spec,
        compiler_params=pltpu.CompilerParams(
            dimension_semantics=("parallel",),        # megacore sharding on v7x
            vmem_limit_bytes=32 * 1024 * 1024,        # ample headroom at TB=8192 (<2 MB used)
        ),
        cost_estimate=pl.CostEstimate(
            flops=flops, transcendentals=0, bytes_accessed=bytes_accessed),
    )(*args)

    return outT                                        # [out_dim, batch]


def causal_masked_mlp_forward(x, weights, masks, biases, *, max_block_batch=8192):
    """Batch-major compatibility wrapper matching the PyTorch forward signature.

    x: [batch, in_dim] -> [batch, out_dim].  In production, fuse these
    transposes into the adjacent producer/consumer and call the _fmajor entry
    point directly (it performs no wrapper-side layout ops).
    """
    xT = x.astype(jnp.float32).T
    outT = causal_masked_mlp_forward_fmajor(
        xT, weights, masks, biases, max_block_batch=max_block_batch)
    return outT.T


# ----------------------------------------------------------------------------
# Pure-JAX reference (mirrors torch nn.Sequential of MaskedLinear + ReLU)
# ----------------------------------------------------------------------------
def reference_forward(x, weights, masks, biases):
    h = x
    n = len(weights)
    for li in range(n):
        h = h @ (weights[li] * masks[li]).T + biases[li]
        if li < n - 1:
            h = jnp.maximum(h, 0.0)
    return h


if __name__ == "__main__":
    # ---- Module configuration (small, consistent with __init__) ----
    n_vars = 4
    starts = list(range(n_vars))
    ends = list(range(n_vars))
    # autoregressive-style causal edges: output j may depend on inputs 0..j
    edges = {j: set(starts[: j + 1]) for j in ends}
    clayer = CLayer(starts, ends, edges)

    hidden_layers = [32, 32]
    outlen = 2
    layers = [len(clayer.starts)] + hidden_layers + [outlen * len(clayer.ends)]
    # layers = [4, 32, 32, 8]

    masks_np = generate_masks(clayer, layers)

    # ---- Deterministic parameter init (nn.Linear-style uniform) ----
    key = jax.random.PRNGKey(0)
    weights, biases = [], []
    for li in range(len(layers) - 1):
        fan_in, fan_out = layers[li], layers[li + 1]
        key, kw, kb = jax.random.split(key, 3)
        bound = 1.0 / math.sqrt(fan_in)
        weights.append(jax.random.uniform(kw, (fan_out, fan_in), jnp.float32,
                                          minval=-bound, maxval=bound))
        biases.append(jax.random.uniform(kb, (fan_out,), jnp.float32,
                                         minval=-bound, maxval=bound))
    masks = [jnp.asarray(m) for m in masks_np]

    # ---- Small example input via the batch-major compatibility wrapper ----
    batch = 8
    key, kx = jax.random.split(key)
    x = jax.random.normal(kx, (batch, layers[0]), jnp.float32)

    out = jax.block_until_ready(causal_masked_mlp_forward(x, weights, masks, biases))
    ref = jax.block_until_ready(reference_forward(x, weights, masks, biases))
    assert out.shape == (batch, outlen * len(clayer.ends))
    np.testing.assert_allclose(np.asarray(out), np.asarray(ref), rtol=1e-5, atol=1e-5)

    # ---- Non-multiple-of-TB batch, >=2 grid tiles, edge-tile masking ----
    batch2 = 1000
    key, kx2 = jax.random.split(key)
    x2 = jax.random.normal(kx2, (batch2, layers[0]), jnp.float32)
    out2T = jax.block_until_ready(
        causal_masked_mlp_forward_fmajor(x2.T, weights, masks, biases,
                                         max_block_batch=512))
    ref2 = jax.block_until_ready(reference_forward(x2, weights, masks, biases))
    assert out2T.shape == (outlen * len(clayer.ends), batch2)
    np.testing.assert_allclose(np.asarray(out2T.T), np.asarray(ref2),
                               rtol=1e-5, atol=1e-5)

    # ---- Larger batch: exercises the in-kernel 512-lane chunk loop + edge tile ----
    batch3 = 3000
    key, kx3 = jax.random.split(key)
    x3 = jax.random.normal(kx3, (batch3, layers[0]), jnp.float32)
    out3T = jax.block_until_ready(
        causal_masked_mlp_forward_fmajor(x3.T, weights, masks, biases))
    ref3 = jax.block_until_ready(reference_forward(x3, weights, masks, biases))
    assert out3T.shape == (outlen * len(clayer.ends), batch3)
    np.testing.assert_allclose(np.asarray(out3T.T), np.asarray(ref3),
                               rtol=1e-5, atol=1e-5)

    print("KERNEL_OK")
</pallas_src>

<mosaic_0001>
module attributes {stable_mosaic.version = 11 : i64} {
  func.func @_made_mlp_kernel(%arg0: i32, %arg1: memref<4x128xf32, #tpu.memory_space<vmem>>, %arg2: memref<32x4xf32, #tpu.memory_space<vmem>>, %arg3: memref<32x1xf32, #tpu.memory_space<vmem>>, %arg4: memref<32x32xf32, #tpu.memory_space<vmem>>, %arg5: memref<32x1xf32, #tpu.memory_space<vmem>>, %arg6: memref<8x32xf32, #tpu.memory_space<vmem>>, %arg7: memref<8x1xf32, #tpu.memory_space<vmem>>, %arg8: memref<8x128xf32, #tpu.memory_space<vmem>>) attributes {dimension_semantics = [#tpu.dimension_semantics<parallel>], iteration_bounds = array<i64: 1>, scalar_prefetch = 0 : i64, scratch_operands = 0 : i64, tpu.core_type = #tpu.core_type<tc>, window_params = [{transform_indices = @transform_0, window_bounds = array<i64: 4, 128>}, {pipeline_mode = #tpu.pipeline_mode<synchronous>, transform_indices = @transform_1, window_bounds = array<i64: 32, 4>}, {pipeline_mode = #tpu.pipeline_mode<synchronous>, transform_indices = @transform_2, window_bounds = array<i64: 32, 1>}, {pipeline_mode = #tpu.pipeline_mode<synchronous>, transform_indices = @transform_3, window_bounds = array<i64: 32, 32>}, {pipeline_mode = #tpu.pipeline_mode<synchronous>, transform_indices = @transform_4, window_bounds = array<i64: 32, 1>}, {pipeline_mode = #tpu.pipeline_mode<synchronous>, transform_indices = @transform_5, window_bounds = array<i64: 8, 32>}, {pipeline_mode = #tpu.pipeline_mode<synchronous>, transform_indices = @transform_6, window_bounds = array<i64: 8, 1>}, {transform_indices = @transform_7, window_bounds = array<i64: 8, 128>}]} {
    %c0 = arith.constant 0 : index
    %c0_0 = arith.constant 0 : index
    %0 = vector.load %arg2[%c0, %c0_0] : memref<32x4xf32, #tpu.memory_space<vmem>>, vector<32x4xf32>
    %c0_1 = arith.constant 0 : index
    %c0_2 = arith.constant 0 : index
    %1 = vector.load %arg4[%c0_1, %c0_2] : memref<32x32xf32, #tpu.memory_space<vmem>>, vector<32x32xf32>
    %c0_3 = arith.constant 0 : index
    %c0_4 = arith.constant 0 : index
    %2 = vector.load %arg6[%c0_3, %c0_4] : memref<8x32xf32, #tpu.memory_space<vmem>>, vector<8x32xf32>
    %c0_5 = arith.constant 0 : index
    %c0_6 = arith.constant 0 : index
    %3 = vector.load %arg3[%c0_5, %c0_6] : memref<32x1xf32, #tpu.memory_space<vmem>>, vector<32x1xf32>
    %c0_7 = arith.constant 0 : index
    %c0_8 = arith.constant 0 : index
    %4 = vector.load %arg5[%c0_7, %c0_8] : memref<32x1xf32, #tpu.memory_space<vmem>>, vector<32x1xf32>
    %c0_9 = arith.constant 0 : index
    %c0_10 = arith.constant 0 : index
    %5 = vector.load %arg7[%c0_9, %c0_10] : memref<8x1xf32, #tpu.memory_space<vmem>>, vector<8x1xf32>
    %c0_i32 = arith.constant 0 : i32
    %c128_i32 = arith.constant 128 : i32
    %6 = arith.muli %c0_i32, %c128_i32 : i32
    %7 = tpu.assume_multiple %6, 128 : i32
    %c0_11 = arith.constant 0 : index
    %8 = arith.index_cast %7 : i32 to index
    %9 = vector.load %arg1[%c0_11, %8] : memref<4x128xf32, #tpu.memory_space<vmem>>, vector<4x128xf32>
    %cst = arith.constant dense<0.000000e+00> : vector<32x128xf32>
    %10 = tpu.matmul %0, %9, %cst {dimension_numbers = #tpu.dot_dimension_numbers<[1], [0], [0], [1], [0, 0, 1, 1], [], []>} : vector<32x4xf32>, vector<4x128xf32>, vector<32x128xf32> -> vector<32x128xf32>
    %11 = vector.broadcast %3 : vector<32x1xf32> to vector<32x128xf32>
    %12 = arith.addf %10, %11 : vector<32x128xf32>
    %cst_12 = arith.constant 0.000000e+00 : f32
    %13 = vector.broadcast %cst_12 : f32 to vector<32x128xf32>
    %14 = arith.maximumf %12, %13 : vector<32x128xf32>
    %cst_13 = arith.constant dense<0.000000e+00> : vector<32x128xf32>
    %15 = tpu.matmul %1, %14, %cst_13 {dimension_numbers = #tpu.dot_dimension_numbers<[1], [0], [0], [1], [0, 0, 1, 1], [], []>} : vector<32x32xf32>, vector<32x128xf32>, vector<32x128xf32> -> vector<32x128xf32>
    %16 = vector.broadcast %4 : vector<32x1xf32> to vector<32x128xf32>
    %17 = arith.addf %15, %16 : vector<32x128xf32>
    %cst_14 = arith.constant 0.000000e+00 : f32
    %18 = vector.broadcast %cst_14 : f32 to vector<32x128xf32>
    %19 = arith.maximumf %17, %18 : vector<32x128xf32>
    %cst_15 = arith.constant dense<0.000000e+00> : vector<8x128xf32>
    %20 = tpu.matmul %2, %19, %cst_15 {dimension_numbers = #tpu.dot_dimension_numbers<[1], [0], [0], [1], [0, 0, 1, 1], [], []>} : vector<8x32xf32>, vector<32x128xf32>, vector<8x128xf32> -> vector<8x128xf32>
    %21 = vector.broadcast %5 : vector<8x1xf32> to vector<8x128xf32>
    %22 = arith.addf %20, %21 : vector<8x128xf32>
    %c0_16 = arith.constant 0 : index
    %23 = arith.index_cast %7 : i32 to index
    %24 = vector.load %arg8[%c0_16, %23] : memref<8x128xf32, #tpu.memory_space<vmem>>, vector<8x128xf32>
    tpu.vector_store %arg8[%c0_16, %23], %22 {strides = array<i32>} : memref<8x128xf32, #tpu.memory_space<vmem>>, vector<8x128xf32>,
    %c1_i32 = arith.constant 1 : i32
    return
  }
  func.func @transform_0(%arg0: i32) -> (i32, i32) {
    %c0_i32 = arith.constant 0 : i32
    %c0_i32_0 = arith.constant 0 : i32
    return %c0_i32, %arg0 : i32, i32
  }
  func.func @transform_1(%arg0: i32) -> (i32, i32) {
    %c0_i32 = arith.constant 0 : i32
    %c0_i32_0 = arith.constant 0 : i32
    %c0_i32_1 = arith.constant 0 : i32
    return %c0_i32, %c0_i32_0 : i32, i32
  }
  func.func @transform_2(%arg0: i32) -> (i32, i32) {
    %c0_i32 = arith.constant 0 : i32
    %c0_i32_0 = arith.constant 0 : i32
    %c0_i32_1 = arith.constant 0 : i32
    return %c0_i32, %c0_i32_0 : i32, i32
  }
  func.func @transform_3(%arg0: i32) -> (i32, i32) {
    %c0_i32 = arith.constant 0 : i32
    %c0_i32_0 = arith.constant 0 : i32
    %c0_i32_1 = arith.constant 0 : i32
    return %c0_i32, %c0_i32_0 : i32, i32
  }
  func.func @transform_4(%arg0: i32) -> (i32, i32) {
    %c0_i32 = arith.constant 0 : i32
    %c0_i32_0 = arith.constant 0 : i32
    %c0_i32_1 = arith.constant 0 : i32
    return %c0_i32, %c0_i32_0 : i32, i32
  }
  func.func @transform_5(%arg0: i32) -> (i32, i32) {
    %c0_i32 = arith.constant 0 : i32
    %c0_i32_0 = arith.constant 0 : i32
    %c0_i32_1 = arith.constant 0 : i32
    return %c0_i32, %c0_i32_0 : i32, i32
  }
  func.func @transform_6(%arg0: i32) -> (i32, i32) {
    %c0_i32 = arith.constant 0 : i32
    %c0_i32_0 = arith.constant 0 : i32
    %c0_i32_1 = arith.constant 0 : i32
    return %c0_i32, %c0_i32_0 : i32, i32
  }
  func.func @transform_7(%arg0: i32) -> (i32, i32) {
    %c0_i32 = arith.constant 0 : i32
    %c0_i32_0 = arith.constant 0 : i32
    return %c0_i32, %arg0 : i32, i32
  }
}

</mosaic_0001>

<llo_original>
// kernel: tpu_custom_call.1
$region0: #{tpu_custom_call.1}
  #allocation0 [shape = 'u32[]', space=smem, size = 0x4, offset = 0x4, fixed_abs, tag = 'smem constant byte address 0x4 - core index']
  #allocation1 [shape = 'u32[144,128]{1,0:T(1,128)}', space=vmem, size = 0x12000, scoped, tag = 'internal scratch']
  %s0 = inlined_call_operand.vmem [shape: f32[4,8], index: 0, kind: input, shape index: {}]
  %s1 = inlined_call_operand.vmem [shape: f32[32,4], index: 1, kind: input, shape index: {}]
  %s2 = inlined_call_operand.vmem [shape: f32[32,1], index: 2, kind: input, shape index: {}]
  %s3 = inlined_call_operand.vmem [shape: f32[32,32], index: 3, kind: input, shape index: {}]
  %s4 = inlined_call_operand.vmem [shape: f32[32,1], index: 4, kind: input, shape index: {}]
  %s5 = inlined_call_operand.vmem [shape: f32[8,32], index: 5, kind: input, shape index: {}]
  %s6 = inlined_call_operand.vmem [shape: f32[8,1], index: 6, kind: input, shape index: {}]
  %s7 = inlined_call_operand.hbm [shape: f32[8,8], index: 7, kind: output, shape index: {}]
  %s8 = sld [smem:[#allocation0]]
  $region38: #{tpu_custom_call.1} parent=0
    _
  %s10 = ssub.s32 1, %s8
  %s11 = scalar_select 0, %s10, %s8
  $region1: #{tpu_custom_call.1} parent=0
    #allocation2 [shape = 'u8[4096]{0}', space=vmem, size = 0x1000, scoped, tag = 'output window, operand 0, single buffered']
    #allocation3 [shape = 's32[1]{0}', space=sflag, size = 0x4, scoped, tag = 'scoped memory for tpu_custom_call.1']
    %12 = vsyncpa [#allocation3], 0
    // Predicated region
    $region2: #{tpu_custom_call.1} parent=1 // pred_check
      _
    $region3: #{tpu_custom_call.1} parent=1 // pred_check_branch
      %14 = sbr.rel (0) target = $region5
    $region4: #{tpu_custom_call.1} parent=1 // pred_region
      _
    $region5: #{tpu_custom_call.1} parent=1 // pred_fallthru
      _
    // Predicated region
    $region6: #{tpu_custom_call.1} parent=1 // pred_check
      _
    $region7: #{tpu_custom_call.1} parent=1 // pred_check_branch
      %16 = sbr.rel (0) target = $region9
    $region8: #{tpu_custom_call.1} parent=1 // pred_region
      _
    $region9: #{tpu_custom_call.1} parent=1 // pred_fallthru
      _
    // Predicated region
    $region10: #{tpu_custom_call.1} parent=1 // pred_check
      _
    $region11: #{tpu_custom_call.1} parent=1 // pred_check_branch
      %18 = sbr.rel (0) target = $region13
    $region12: #{tpu_custom_call.1} parent=1 // pred_region
      _
    $region13: #{tpu_custom_call.1} parent=1 // pred_fallthru
      _
    // Predicated region
    $region14: #{tpu_custom_call.1} parent=1 // pred_check
      _
    $region15: #{tpu_custom_call.1} parent=1 // pred_check_branch
      %20 = sbr.rel (0) target = $region17
    $region16: #{tpu_custom_call.1} parent=1 // pred_region
      _
    $region17: #{tpu_custom_call.1} parent=1 // pred_fallthru
      _
    // Predicated region
    $region18: #{tpu_custom_call.1} parent=1 // pred_check
      _
    $region19: #{tpu_custom_call.1} parent=1 // pred_check_branch
      %22 = sbr.rel (0) target = $region21
    $region20: #{tpu_custom_call.1} parent=1 // pred_region
      _
    $region21: #{tpu_custom_call.1} parent=1 // pred_fallthru
      _
    // Predicated region
    $region22: #{tpu_custom_call.1} parent=1 // pred_check
      _
    $region23: #{tpu_custom_call.1} parent=1 // pred_check_branch
      %24 = sbr.rel (0) target = $region25
    $region24: #{tpu_custom_call.1} parent=1 // pred_region
      _
    $region25: #{tpu_custom_call.1} parent=1 // pred_fallthru
      _
    // Predicated region
    $region26: #{tpu_custom_call.1} parent=1 // pred_check
      _
    $region27: #{tpu_custom_call.1} parent=1 // pred_check_branch
      %26 = sbr.rel (0) target = $region29
    $region28: #{tpu_custom_call.1} parent=1 // pred_region
      _
    $region29: #{tpu_custom_call.1} parent=1 // pred_fallthru
      _
    %v27 = vld [vmem:[%s1] sm:$0xff]
    %v28 = vld [vmem:[%s1 + $0x8] sm:$0xff]
    %v29 = vld [vmem:[%s1 + $0x10] sm:$0xff]
    %v30 = vld [vmem:[%s1 + $0x18] sm:$0xff]
    %v31 = vld [vmem:[%s3] sm:$0xff]
    %v32 = vld [vmem:[%s3 + $0x8] sm:$0xff]
    %v33 = vld [vmem:[%s3 + $0x10] sm:$0xff]
    %v34 = vld [vmem:[%s3 + $0x18] sm:$0xff]
    %v35 = vld [vmem:[%s5] sm:$0xff]
    %v36 = vld [vmem:[%s2] sm:$0xff]
    %v37 = vld [vmem:[%s2 + $0x8] sm:$0xff]
    %v38 = vld [vmem:[%s2 + $0x10] sm:$0xff]
    %v39 = vld [vmem:[%s2 + $0x18] sm:$0xff]
    %v40 = vld [vmem:[%s4] sm:$0xff]
    %v41 = vld [vmem:[%s4 + $0x8] sm:$0xff]
    %v42 = vld [vmem:[%s4 + $0x10] sm:$0xff]
    %v43 = vld [vmem:[%s4 + $0x18] sm:$0xff]
    %v44 = vld [vmem:[%s6] sm:$0xff]
    %v45 = vld [vmem:[%s0] sm:$0xf]
    %47 = vset.pattern.permute.xlu0 0
    %48 = vperm.xlu0 %47, %v36
    %v49 = vpop.permute.xlu0 %48
    %52 = vset.pattern.permute.xlu0 0
    %53 = vperm.xlu0 %52, %v37
    %v54 = vpop.permute.xlu0 %53
    %57 = vset.pattern.permute.xlu0 0
    %58 = vperm.xlu0 %57, %v38
    %v59 = vpop.permute.xlu0 %58
    %62 = vset.pattern.permute.xlu0 0
    %63 = vperm.xlu0 %62, %v39
    %v64 = vpop.permute.xlu0 %63
    %vm66 = vcmask 31744
    %v68 = vsel %vm66, %v27, 0
    %v71 = vsel %vm66, %v28, 0
    %v74 = vsel %vm66, %v29, 0
    %v77 = vsel %vm66, %v30, 0
    %vm79 = vcmask 1043456
    %v81 = vsel %vm79, %v45, 0
    %83 = vmatprep.subr.mxu0 0.0
    %84 = vmatpush1.msra.mxu0 %v81
    %85 = vmatprep.subr.mxu0 0.0
    %86 = vmatpush1.msra.mxu0 0.0
    %87 = vmatprep.subr.mxu0 0.0
    %88 = vmatpush1.msra.mxu0 0.0
    %89 = vmatprep.subr.mxu0 0.0
    %90 = vmatpush1.msra.mxu0 0.0
    %91 = vmatprep.subr.mxu0 0.0
    %92 = vmatpush1.msra.mxu0 0.0
    %93 = vmatprep.subr.mxu0 0.0
    %94 = vmatpush1.msra.mxu0 0.0
    %95 = vmatprep.subr.mxu0 0.0
    %96 = vmatpush1.msra.mxu0 0.0
    %97 = vmatprep.subr.mxu0 0.0
    %98 = vmatpush1.msra.mxu0 0.0
    %99 = vmatprep.subr.mxu0 0.0
    %100 = vmatpush1.msra.mxu0 0.0
    %101 = vmatprep.subr.mxu0 0.0
    %102 = vmatpush1.msra.mxu0 0.0
    %103 = vmatprep.subr.mxu0 0.0
    %104 = vmatpush1.msra.mxu0 0.0
    %105 = vmatprep.subr.mxu0 0.0
    %106 = vmatpush1.msra.mxu0 0.0
    %107 = vmatprep.subr.mxu0 0.0
    %108 = vmatpush1.msra.mxu0 0.0
    %109 = vmatprep.subr.mxu0 0.0
    %110 = vmatpush1.msra.mxu0 0.0
    %111 = vmatprep.subr.mxu0 0.0
    %112 = vmatpush1.msra.mxu0 0.0
    %113 = vmatprep.subr.mxu0 0.0
    %114 = vmatpush1.msra.mxu0 0.0
    %115 = vmatprep.subr.mxu0 0.0
    %116 = vmatpush1.msra.mxu0 0.0
    %117 = vmatprep.subr.mxu0 0.0
    %118 = vmatpush1.msra.mxu0 0.0
    %119 = vmatprep.subr.mxu0 0.0
    %120 = vmatpush1.msra.mxu0 0.0
    %121 = vmatprep.subr.mxu0 0.0
    %122 = vmatpush1.msra.mxu0 0.0
    %123 = vmatprep.subr.mxu0 0.0
    %124 = vmatpush1.msra.mxu0 0.0
    %125 = vmatprep.subr.mxu0 0.0
    %126 = vmatpush1.msra.mxu0 0.0
    %127 = vmatprep.subr.mxu0 0.0
    %128 = vmatpush1.msra.mxu0 0.0
    %129 = vmatprep.subr.mxu0 0.0
    %130 = vmatpush1.msra.mxu0 0.0
    %131 = vmatprep.subr.mxu0 0.0
    %132 = vmatpush1.msra.mxu0 0.0
    %133 = vmatprep.subr.mxu0 0.0
    %134 = vmatpush1.msra.mxu0 0.0
    %135 = vmatprep.subr.mxu0 0.0
    %136 = vmatpush1.msra.mxu0 0.0
    %137 = vmatprep.subr.mxu0 0.0
    %138 = vmatpush1.msra.mxu0 0.0
    %139 = vmatprep.subr.mxu0 0.0
    %140 = vmatpush1.msra.mxu0 0.0
    %141 = vmatprep.subr.mxu0 0.0
    %142 = vmatpush1.msra.mxu0 0.0
    %143 = vmatprep.subr.mxu0 0.0
    %144 = vmatpush1.msra.mxu0 0.0
    %145 = vmatprep.subr.mxu0 0.0
    %146 = vmatpush1.msra.mxu0 0.0
    %147 = vmatprep.mubr.f32.mxu0 0.0
    %148 = vmatmul.mubr.f32.gmra.mrb[0].mxu0 %v68
    %v149 = vpop.f32.mrb[0].mxu0
    %v150 = vadd.f32 %v49, %v149
    %v151 = vpop.f32.mrb[0].mxu0
    %152 = vmatprep.mubr.f32.mxu0 0.0
    %153 = vmatmul.mubr.f32.gmra.mrb[0].mxu0 %v71
    %v154 = vpop.f32.mrb[0].mxu0
    %v155 = vadd.f32 %v54, %v154
    %v156 = vpop.f32.mrb[0].mxu0
    %157 = vmatprep.mubr.f32.mxu0 0.0
    %158 = vmatmul.mubr.f32.gmra.mrb[0].mxu0 %v74
    %v159 = vpop.f32.mrb[0].mxu0
    %v160 = vadd.f32 %v59, %v159
    %v161 = vpop.f32.mrb[0].mxu0
    %162 = vmatprep.mubr.f32.mxu0 0.0
    %163 = vmatmul.mubr.f32.gmra.mrb[0].mxu0 %v77
    %v164 = vpop.f32.mrb[0].mxu0
    %v165 = vadd.f32 %v64, %v164
    %v166 = vpop.f32.mrb[0].mxu0
    %167 = vdwg.mxu0
    %v168 = vmax.f32 %v150, 0.0
    %v169 = vmax.f32 %v155, 0.0
    %v170 = vmax.f32 %v160, 0.0
    %v171 = vmax.f32 %v165, 0.0
    %173 = vset.pattern.permute.xlu0 0
    %174 = vperm.xlu0 %173, %v40
    %v175 = vpop.permute.xlu0 %174
    %178 = vset.pattern.permute.xlu0 0
    %179 = vperm.xlu0 %178, %v41
    %v180 = vpop.permute.xlu0 %179
    %183 = vset.pattern.permute.xlu0 0
    %184 = vperm.xlu0 %183, %v42
    %v185 = vpop.permute.xlu0 %184
    %188 = vset.pattern.permute.xlu0 0
    %189 = vperm.xlu0 %188, %v43
    %v190 = vpop.permute.xlu0 %189
    %vm192 = vcmask 261120
    %v194 = vsel %vm192, %v31, 0
    %v197 = vsel %vm192, %v32, 0
    %v200 = vsel %vm192, %v33, 0
    %v203 = vsel %vm192, %v34, 0
    %205 = vmatprep.subr.mxu0 0.0
    %206 = vmatpush1.msra.mxu0 %v168
    %207 = vmatprep.subr.mxu0 0.0
    %208 = vmatpush1.msra.mxu0 %v169
    %209 = vmatprep.subr.mxu0 0.0
    %210 = vmatpush1.msra.mxu0 %v170
    %211 = vmatprep.subr.mxu0 0.0
    %212 = vmatpush1.msra.mxu0 %v171
    %213 = vmatprep.subr.mxu0 0.0
    %214 = vmatpush1.msra.mxu0 0.0
    %215 = vmatprep.subr.mxu0 0.0
    %216 = vmatpush1.msra.mxu0 0.0
    %217 = vmatprep.subr.mxu0 0.0
    %218 = vmatpush1.msra.mxu0 0.0
    %219 = vmatprep.subr.mxu0 0.0
    %220 = vmatpush1.msra.mxu0 0.0
    %221 = vmatprep.subr.mxu0 0.0
    %222 = vmatpush1.msra.mxu0 0.0
    %223 = vmatprep.subr.mxu0 0.0
    %224 = vmatpush1.msra.mxu0 0.0
    %225 = vmatprep.subr.mxu0 0.0
    %226 = vmatpush1.msra.mxu0 0.0
    %227 = vmatprep.subr.mxu0 0.0
    %228 = vmatpush1.msra.mxu0 0.0
    %229 = vmatprep.subr.mxu0 0.0
    %230 = vmatpush1.msra.mxu0 0.0
    %231 = vmatprep.subr.mxu0 0.0
    %232 = vmatpush1.msra.mxu0 0.0
    %233 = vmatprep.subr.mxu0 0.0
    %234 = vmatpush1.msra.mxu0 0.0
    %235 = vmatprep.subr.mxu0 0.0
    %236 = vmatpush1.msra.mxu0 0.0
    %237 = vmatprep.subr.mxu0 0.0
    %238 = vmatpush1.msra.mxu0 0.0
    %239 = vmatprep.subr.mxu0 0.0
    %240 = vmatpush1.msra.mxu0 0.0
    %241 = vmatprep.subr.mxu0 0.0
    %242 = vmatpush1.msra.mxu0 0.0
    %243 = vmatprep.subr.mxu0 0.0
    %244 = vmatpush1.msra.mxu0 0.0
    %245 = vmatprep.subr.mxu0 0.0
    %246 = vmatpush1.msra.mxu0 0.0
    %247 = vmatprep.subr.mxu0 0.0
    %248 = vmatpush1.msra.mxu0 0.0
    %249 = vmatprep.subr.mxu0 0.0
    %250 = vmatpush1.msra.mxu0 0.0
    %251 = vmatprep.subr.mxu0 0.0
    %252 = vmatpush1.msra.mxu0 0.0
    %253 = vmatprep.subr.mxu0 0.0
    %254 = vmatpush1.msra.mxu0 0.0
    %255 = vmatprep.subr.mxu0 0.0
    %256 = vmatpush1.msra.mxu0 0.0
    %257 = vmatprep.subr.mxu0 0.0
    %258 = vmatpush1.msra.mxu0 0.0
    %259 = vmatprep.subr.mxu0 0.0
    %260 = vmatpush1.msra.mxu0 0.0
    %261 = vmatprep.subr.mxu0 0.0
    %262 = vmatpush1.msra.mxu0 0.0
    %263 = vmatprep.subr.mxu0 0.0
    %264 = vmatpush1.msra.mxu0 0.0
    %265 = vmatprep.subr.mxu0 0.0
    %266 = vmatpush1.msra.mxu0 0.0
    %267 = vmatprep.subr.mxu0 0.0
    %268 = vmatpush1.msra.mxu0 0.0
    %269 = vmatprep.mubr.f32.mxu0 0.0
    %270 = vmatmul.mubr.f32.gmra.mrb[0].mxu0 %v194
    %v271 = vpop.f32.mrb[0].mxu0
    %v272 = vadd.f32 %v175, %v271
    %v273 = vpop.f32.mrb[0].mxu0
    %274 = vmatprep.mubr.f32.mxu0 0.0
    %275 = vmatmul.mubr.f32.gmra.mrb[0].mxu0 %v197
    %v276 = vpop.f32.mrb[0].mxu0
    %v277 = vadd.f32 %v180, %v276
    %v278 = vpop.f32.mrb[0].mxu0
    %279 = vmatprep.mubr.f32.mxu0 0.0
    %280 = vmatmul.mubr.f32.gmra.mrb[0].mxu0 %v200
    %v281 = vpop.f32.mrb[0].mxu0
    %v282 = vadd.f32 %v185, %v281
    %v283 = vpop.f32.mrb[0].mxu0
    %284 = vmatprep.mubr.f32.mxu0 0.0
    %285 = vmatmul.mubr.f32.gmra.mrb[0].mxu0 %v203
    %v286 = vpop.f32.mrb[0].mxu0
    %v287 = vadd.f32 %v190, %v286
    %v288 = vpop.f32.mrb[0].mxu0
    %289 = vdwg.mxu0
    %v290 = vmax.f32 %v272, 0.0
    %v291 = vmax.f32 %v277, 0.0
    %v292 = vmax.f32 %v282, 0.0
    %v293 = vmax.f32 %v287, 0.0
    %295 = vset.pattern.permute.xlu0 0
    %296 = vperm.xlu0 %295, %v44
    %v297 = vpop.permute.xlu0 %296
    %v300 = vsel %vm192, %v35, 0
    %302 = vmatprep.subr.mxu0 0.0
    %303 = vmatpush1.msra.mxu0 %v290
    %304 = vmatprep.subr.mxu0 0.0
    %305 = vmatpush1.msra.mxu0 %v291
    %306 = vmatprep.subr.mxu0 0.0
    %307 = vmatpush1.msra.mxu0 %v292
    %308 = vmatprep.subr.mxu0 0.0
    %309 = vmatpush1.msra.mxu0 %v293
    %310 = vmatprep.subr.mxu0 0.0
    %311 = vmatpush1.msra.mxu0 0.0
    %312 = vmatprep.subr.mxu0 0.0
    %313 = vmatpush1.msra.mxu0 0.0
    %314 = vmatprep.subr.mxu0 0.0
    %315 = vmatpush1.msra.mxu0 0.0
    %316 = vmatprep.subr.mxu0 0.0
    %317 = vmatpush1.msra.mxu0 0.0
    %318 = vmatprep.subr.mxu0 0.0
    %319 = vmatpush1.msra.mxu0 0.0
    %320 = vmatprep.subr.mxu0 0.0
    %321 = vmatpush1.msra.mxu0 0.0
    %322 = vmatprep.subr.mxu0 0.0
    %323 = vmatpush1.msra.mxu0 0.0
    %324 = vmatprep.subr.mxu0 0.0
    %325 = vmatpush1.msra.mxu0 0.0
    %326 = vmatprep.subr.mxu0 0.0
    %327 = vmatpush1.msra.mxu0 0.0
    %328 = vmatprep.subr.mxu0 0.0
    %329 = vmatpush1.msra.mxu0 0.0
    %330 = vmatprep.subr.mxu0 0.0
    %331 = vmatpush1.msra.mxu0 0.0
    %332 = vmatprep.subr.mxu0 0.0
    %333 = vmatpush1.msra.mxu0 0.0
    %334 = vmatprep.subr.mxu0 0.0
    %335 = vmatpush1.msra.mxu0 0.0
    %336 = vmatprep.subr.mxu0 0.0
    %337 = vmatpush1.msra.mxu0 0.0
    %338 = vmatprep.subr.mxu0 0.0
    %339 = vmatpush1.msra.mxu0 0.0
    %340 = vmatprep.subr.mxu0 0.0
    %341 = vmatpush1.msra.mxu0 0.0
    %342 = vmatprep.subr.mxu0 0.0
    %343 = vmatpush1.msra.mxu0 0.0
    %344 = vmatprep.subr.mxu0 0.0
    %345 = vmatpush1.msra.mxu0 0.0
    %346 = vmatprep.subr.mxu0 0.0
    %347 = vmatpush1.msra.mxu0 0.0
    %348 = vmatprep.subr.mxu0 0.0
    %349 = vmatpush1.msra.mxu0 0.0
    %350 = vmatprep.subr.mxu0 0.0
    %351 = vmatpush1.msra.mxu0 0.0
    %352 = vmatprep.subr.mxu0 0.0
    %353 = vmatpush1.msra.mxu0 0.0
    %354 = vmatprep.subr.mxu0 0.0
    %355 = vmatpush1.msra.mxu0 0.0
    %356 = vmatprep.subr.mxu0 0.0
    %357 = vmatpush1.msra.mxu0 0.0
    %358 = vmatprep.subr.mxu0 0.0
    %359 = vmatpush1.msra.mxu0 0.0
    %360 = vmatprep.subr.mxu0 0.0
    %361 = vmatpush1.msra.mxu0 0.0
    %362 = vmatprep.subr.mxu0 0.0
    %363 = vmatpush1.msra.mxu0 0.0
    %364 = vmatprep.subr.mxu0 0.0
    %365 = vmatpush1.msra.mxu0 0.0
    %366 = vmatprep.mubr.f32.mxu0 0.0
    %367 = vmatmul.mubr.f32.gmra.mrb[0].mxu0 %v300
    %v368 = vpop.f32.mrb[0].mxu0
    %v369 = vadd.f32 %v297, %v368
    %v370 = vpop.f32.mrb[0].mxu0
    %371 = vdwg.mxu0
    %372 = vst [vmem:[#allocation2] sm:$0xff] %v369
    // Predicated region
    $region30: #{tpu_custom_call.1} parent=1 // pred_check
      _
    $region31: #{tpu_custom_call.1} parent=1 // pred_check_branch
      %374 = sbr.rel (0) target = $region33
    $region32: #{tpu_custom_call.1} parent=1 // pred_region
      %s376 = ssub.s32 128, 128
      %377 = vsyncadd [#allocation3], %s376
      %s379 = sshll.u32 [#allocation2], 4
      %s380 = int_to_ptr.vmem [resolvable:$true] %s379
      %382 = dma.vmem_to_hbm [thread:$0]  %s380, 128, %s7, [#allocation3]
    $region33: #{tpu_custom_call.1} parent=1 // pred_fallthru
      _
    // Predicated region
    $region34: #{tpu_custom_call.1} parent=1 // pred_check
      _
    $region35: #{tpu_custom_call.1} parent=1 // pred_check_branch
      %384 = sbr.rel (0) target = $region37
    $region36: #{tpu_custom_call.1} parent=1 // pred_region
      %385 = dma.done [#allocation3], 128
    $region37: #{tpu_custom_call.1} parent=1 // pred_fallthru
      _
    %386 = vsyncpa [#allocation3], 1

</llo_original>
